<compile_context>
chip_gen: v6e
topology: v6e:2x2x1
jax: 0.10.0
libtpu: 0.0.40
codegen_flags: <defaults>
</compile_context>

<pallas_src>
import functools

import jax
import jax.numpy as jnp
from jax.experimental import pallas as pl
from jax.experimental.pallas import tpu as pltpu

LANE = 128  # vreg lane width — hidden feature dims are zero-padded to this


def _cdiv(a, b):
    return (a + b - 1) // b


def _round_up(n, m):
    return _cdiv(n, m) * m


def mlp_kernel(x_ref, w1_ref, b1_ref, w2_ref, b2_ref, w3_ref, b3_ref, o_ref):
    # Biases stay f32; matmul inputs are cast to the weight dtype so bf16
    # weights give a bf16-native MXU pass; accumulation is always f32.
    b1 = b1_ref[...]
    b2 = b2_ref[...]
    b3 = b3_ref[...]

    # layer1 + ReLU
    h1 = jnp.dot(x_ref[...].astype(w1_ref.dtype), w1_ref[...],
                 preferred_element_type=jnp.float32)
    h1 = jnp.maximum(h1 + b1, 0.0)

    # layer2 + ReLU
    h2 = jnp.dot(h1.astype(w2_ref.dtype), w2_ref[...],
                 preferred_element_type=jnp.float32)
    h2 = jnp.maximum(h2 + b2, 0.0)

    # layer3 + Sigmoid — activate and store only the logical output columns;
    # the HBM writeback is out_size lanes wide (masked vst, cheap: VPU/store
    # slots have large slack here), not the padded 128.
    z3 = jnp.dot(h2.astype(w3_ref.dtype), w3_ref[...],
                 preferred_element_type=jnp.float32) + b3
    n_out = o_ref.shape[-1]
    o_ref[...] = jax.nn.sigmoid(z3[:, :n_out])


@functools.partial(jax.jit, static_argnames=("out_size", "tile_b"))
def neural_network_forward(x, params, *, out_size, tile_b=1024):
    """Fused forward pass.

    x:      (B, input_size), f32 or bf16.
    params: lane-padded params from pad_params():
              w1 (in, 128), w2 (128, 128), w3 (128, 128)  [f32 or bf16]
              b1/b2/b3 (1, 128)                            [f32]
    Returns (B, out_size) f32.
    """
    w1, b1 = params["w1"], params["b1"]
    w2, b2 = params["w2"], params["b2"]
    w3, b3 = params["w3"], params["b3"]

    B, in_size = x.shape

    # Sublane packing granularity depends on x dtype: f32 -> 8, bf16 -> 16, i8 -> 32.
    sublane = 32 // x.dtype.itemsize

    # Batch tiling:
    #  * >= 2 grid steps whenever the batch allows it (v7x megacore 2x; no-op
    #    on single-TC v5e/v6e),
    #  * balanced tiles so worst-case padding is < one sublane group per tile,
    #  * tiles capped at tile_b (per-step ~0.35us overhead amortizes by ~1K rows).
    n_target = max(_cdiv(B, tile_b), 2)
    n_tiles = max(1, min(n_target, B // sublane))
    tb = _round_up(_cdiv(B, n_tiles), sublane)
    b_pad = _round_up(B, tb)
    if b_pad != B:
        x = jnp.pad(x, ((0, b_pad - B), (0, 0)))
    grid = (b_pad // tb,)

    weight_bytes = sum(int(a.size) * a.dtype.itemsize
                       for a in (w1, b1, w2, b2, w3, b3))
    cost = pl.CostEstimate(
        # Padded matmul FLOPs actually executed on the MXU.
        flops=2 * b_pad * (in_size * LANE + LANE * LANE + LANE * LANE),
        transcendentals=b_pad * out_size,                    # sigmoid (narrow)
        bytes_accessed=(b_pad * in_size * x.dtype.itemsize   # x read
                        + b_pad * out_size * 4               # narrow f32 write
                        + weight_bytes),
    )

    const = lambda i: (0, 0)  # weights/biases: same block every grid step
    # NOTE: VMEM use at tile_b<=2048 is well under every generation's default
    # scoped limit; set pltpu.CompilerParams(vmem_limit_bytes=...) only if the
    # tile is pushed far beyond that (mainly relevant on v5e's 16 MiB default).
    out_padded = pl.pallas_call(
        mlp_kernel,
        out_shape=jax.ShapeDtypeStruct((b_pad, out_size), jnp.float32),
        grid=grid,
        in_specs=[
            pl.BlockSpec((tb, in_size), lambda i: (i, 0)),   # x: batch-tiled
            pl.BlockSpec(w1.shape, const),
            pl.BlockSpec(b1.shape, const),
            pl.BlockSpec(w2.shape, const),
            pl.BlockSpec(b2.shape, const),
            pl.BlockSpec(w3.shape, const),
            pl.BlockSpec(b3.shape, const),
        ],
        out_specs=pl.BlockSpec((tb, out_size), lambda i: (i, 0)),
        compiler_params=pltpu.CompilerParams(
            dimension_semantics=("parallel",),               # megacore on v7x
        ),
        cost_estimate=cost,
    )(x, w1, b1, w2, b2, w3, b3)

    # Drop padded batch rows (padded-lane columns no longer exist in HBM).
    return out_padded[:B]


def init_logical_params(key, input_size, output_size):
    """PyTorch nn.Linear-style init (U(-1/sqrt(fan_in), 1/sqrt(fan_in))),
    stored as (in, out) weights / (1, out) biases (y = x @ W + b)."""
    dims = [(input_size, 64), (64, 32), (32, output_size)]
    params = {}
    for idx, (fan_in, fan_out) in enumerate(dims, start=1):
        key, kw, kb = jax.random.split(key, 3)
        bound = 1.0 / (fan_in ** 0.5)
        params[f"w{idx}"] = jax.random.uniform(
            kw, (fan_in, fan_out), jnp.float32, -bound, bound)
        params[f"b{idx}"] = jax.random.uniform(
            kb, (1, fan_out), jnp.float32, -bound, bound)
    return params


def pad_params(logical, compute_dtype=jnp.float32):
    """Zero-pad hidden/output feature dims to 128 lanes; weights in
    compute_dtype (f32 or bf16), biases stay f32."""
    padded = {}
    for idx in (1, 2, 3):
        w = logical[f"w{idx}"]
        b = logical[f"b{idx}"]
        in_p = w.shape[0] if idx == 1 else LANE
        wp = jnp.zeros((in_p, LANE), compute_dtype)
        wp = wp.at[: w.shape[0], : w.shape[1]].set(w.astype(compute_dtype))
        bp = jnp.zeros((1, LANE), jnp.float32).at[:, : b.shape[1]].set(b)
        padded[f"w{idx}"] = wp
        padded[f"b{idx}"] = bp
    return padded


def reference_forward(x, logical):
    h1 = jnp.maximum(x @ logical["w1"] + logical["b1"], 0.0)
    h2 = jnp.maximum(h1 @ logical["w2"] + logical["b2"], 0.0)
    return jax.nn.sigmoid(h2 @ logical["w3"] + logical["b3"])


if __name__ == "__main__":
    key = jax.random.PRNGKey(0)
    batch, input_size, output_size = 8, 16, 4

    key, kx = jax.random.split(key)
    x = jax.random.normal(kx, (batch, input_size), jnp.float32)
    logical = init_logical_params(key, input_size, output_size)
    ref = reference_forward(x, logical)

    # f32 path (exact vs reference).
    params_f32 = pad_params(logical, jnp.float32)
    out = neural_network_forward(x, params_f32, out_size=output_size)
    out = jax.block_until_ready(out)
    assert out.shape == (batch, output_size)
    assert jnp.allclose(out, ref, atol=1e-5, rtol=1e-5), "f32 mismatch vs reference"

    # Production path: bf16 x + bf16 weights (bf16-native MXU on v5e/v6e/v7x,
    # halves x HBM traffic); bias-add/ReLU/sigmoid and accumulation stay f32.
    params_bf16 = pad_params(logical, jnp.bfloat16)
    out_bf16 = neural_network_forward(
        x.astype(jnp.bfloat16), params_bf16, out_size=output_size)
    out_bf16 = jax.block_until_ready(out_bf16)
    assert out_bf16.shape == (batch, output_size)
    assert jnp.allclose(out_bf16, ref, atol=5e-2, rtol=5e-2), "bf16 mismatch vs reference"

    print("KERNEL_OK")
</pallas_src>

<mosaic_0001>
module attributes {stable_mosaic.version = 11 : i64} {
  func.func @mlp_kernel(%arg0: i32, %arg1: memref<8x16xf32, #tpu.memory_space<vmem>>, %arg2: memref<16x128xf32, #tpu.memory_space<vmem>>, %arg3: memref<1x128xf32, #tpu.memory_space<vmem>>, %arg4: memref<128x128xf32, #tpu.memory_space<vmem>>, %arg5: memref<1x128xf32, #tpu.memory_space<vmem>>, %arg6: memref<128x128xf32, #tpu.memory_space<vmem>>, %arg7: memref<1x128xf32, #tpu.memory_space<vmem>>, %arg8: memref<8x4xf32, #tpu.memory_space<vmem>>) attributes {dimension_semantics = [#tpu.dimension_semantics<parallel>], iteration_bounds = array<i64: 1>, scalar_prefetch = 0 : i64, scratch_operands = 0 : i64, tpu.core_type = #tpu.core_type<tc>, window_params = [{transform_indices = @transform_0, window_bounds = array<i64: 8, 16>}, {pipeline_mode = #tpu.pipeline_mode<synchronous>, transform_indices = @transform_1, window_bounds = array<i64: 16, 128>}, {pipeline_mode = #tpu.pipeline_mode<synchronous>, transform_indices = @transform_2, window_bounds = array<i64: 1, 128>}, {pipeline_mode = #tpu.pipeline_mode<synchronous>, transform_indices = @transform_3, window_bounds = array<i64: 128, 128>}, {pipeline_mode = #tpu.pipeline_mode<synchronous>, transform_indices = @transform_4, window_bounds = array<i64: 1, 128>}, {pipeline_mode = #tpu.pipeline_mode<synchronous>, transform_indices = @transform_5, window_bounds = array<i64: 128, 128>}, {pipeline_mode = #tpu.pipeline_mode<synchronous>, transform_indices = @transform_6, window_bounds = array<i64: 1, 128>}, {transform_indices = @transform_7, window_bounds = array<i64: 8, 4>}]} {
    %c0 = arith.constant 0 : index
    %c0_0 = arith.constant 0 : index
    %0 = vector.load %arg3[%c0, %c0_0] : memref<1x128xf32, #tpu.memory_space<vmem>>, vector<1x128xf32>
    %c0_1 = arith.constant 0 : index
    %c0_2 = arith.constant 0 : index
    %1 = vector.load %arg5[%c0_1, %c0_2] : memref<1x128xf32, #tpu.memory_space<vmem>>, vector<1x128xf32>
    %c0_3 = arith.constant 0 : index
    %c0_4 = arith.constant 0 : index
    %2 = vector.load %arg7[%c0_3, %c0_4] : memref<1x128xf32, #tpu.memory_space<vmem>>, vector<1x128xf32>
    %c0_5 = arith.constant 0 : index
    %c0_6 = arith.constant 0 : index
    %3 = vector.load %arg1[%c0_5, %c0_6] : memref<8x16xf32, #tpu.memory_space<vmem>>, vector<8x16xf32>
    %c0_7 = arith.constant 0 : index
    %c0_8 = arith.constant 0 : index
    %4 = vector.load %arg2[%c0_7, %c0_8] : memref<16x128xf32, #tpu.memory_space<vmem>>, vector<16x128xf32>
    %cst = arith.constant dense<0.000000e+00> : vector<8x128xf32>
    %5 = tpu.matmul %3, %4, %cst {dimension_numbers = #tpu.dot_dimension_numbers<[1], [0], [0], [1], [0, 0, 1, 1], [], []>} : vector<8x16xf32>, vector<16x128xf32>, vector<8x128xf32> -> vector<8x128xf32>
    %6 = vector.broadcast %0 : vector<1x128xf32> to vector<8x128xf32>
    %7 = arith.addf %5, %6 : vector<8x128xf32>
    %cst_9 = arith.constant 0.000000e+00 : f32
    %8 = vector.broadcast %cst_9 : f32 to vector<8x128xf32>
    %9 = arith.maximumf %7, %8 : vector<8x128xf32>
    %c0_10 = arith.constant 0 : index
    %c0_11 = arith.constant 0 : index
    %10 = vector.load %arg4[%c0_10, %c0_11] : memref<128x128xf32, #tpu.memory_space<vmem>>, vector<128x128xf32>
    %cst_12 = arith.constant dense<0.000000e+00> : vector<8x128xf32>
    %11 = tpu.matmul %9, %10, %cst_12 {dimension_numbers = #tpu.dot_dimension_numbers<[1], [0], [0], [1], [0, 0, 1, 1], [], []>} : vector<8x128xf32>, vector<128x128xf32>, vector<8x128xf32> -> vector<8x128xf32>
    %12 = vector.broadcast %1 : vector<1x128xf32> to vector<8x128xf32>
    %13 = arith.addf %11, %12 : vector<8x128xf32>
    %cst_13 = arith.constant 0.000000e+00 : f32
    %14 = vector.broadcast %cst_13 : f32 to vector<8x128xf32>
    %15 = arith.maximumf %13, %14 : vector<8x128xf32>
    %c0_14 = arith.constant 0 : index
    %c0_15 = arith.constant 0 : index
    %16 = vector.load %arg6[%c0_14, %c0_15] : memref<128x128xf32, #tpu.memory_space<vmem>>, vector<128x128xf32>
    %cst_16 = arith.constant dense<0.000000e+00> : vector<8x128xf32>
    %17 = tpu.matmul %15, %16, %cst_16 {dimension_numbers = #tpu.dot_dimension_numbers<[1], [0], [0], [1], [0, 0, 1, 1], [], []>} : vector<8x128xf32>, vector<128x128xf32>, vector<8x128xf32> -> vector<8x128xf32>
    %18 = vector.broadcast %2 : vector<1x128xf32> to vector<8x128xf32>
    %19 = arith.addf %17, %18 : vector<8x128xf32>
    %20 = vector.extract_strided_slice %19 {offsets = [0, 0], sizes = [8, 4], strides = [1, 1]} : vector<8x128xf32> to vector<8x4xf32>
    %21 = arith.negf %20 : vector<8x4xf32>
    %22 = math.exp %21 : vector<8x4xf32>
    %cst_17 = arith.constant 1.000000e+00 : f32
    %23 = vector.broadcast %cst_17 : f32 to vector<8x4xf32>
    %24 = arith.addf %23, %22 : vector<8x4xf32>
    %25 = arith.divf %23, %24 : vector<8x4xf32>
    %c0_18 = arith.constant 0 : index
    %c0_19 = arith.constant 0 : index
    %26 = vector.load %arg8[%c0_18, %c0_19] : memref<8x4xf32, #tpu.memory_space<vmem>>, vector<8x4xf32>
    tpu.vector_store %arg8[%c0_18, %c0_19], %25 {strides = array<i32>} : memref<8x4xf32, #tpu.memory_space<vmem>>, vector<8x4xf32>,
    return
  }
  func.func @transform_0(%arg0: i32) -> (i32, i32) {
    %c0_i32 = arith.constant 0 : i32
    %c0_i32_0 = arith.constant 0 : i32
    return %arg0, %c0_i32 : i32, i32
  }
  func.func @transform_1(%arg0: i32) -> (i32, i32) {
    %c0_i32 = arith.constant 0 : i32
    %c0_i32_0 = arith.constant 0 : i32
    %c0_i32_1 = arith.constant 0 : i32
    return %c0_i32, %c0_i32_0 : i32, i32
  }
  func.func @transform_2(%arg0: i32) -> (i32, i32) {
    %c0_i32 = arith.constant 0 : i32
    %c0_i32_0 = arith.constant 0 : i32
    %c0_i32_1 = arith.constant 0 : i32
    return %c0_i32, %c0_i32_0 : i32, i32
  }
  func.func @transform_3(%arg0: i32) -> (i32, i32) {
    %c0_i32 = arith.constant 0 : i32
    %c0_i32_0 = arith.constant 0 : i32
    %c0_i32_1 = arith.constant 0 : i32
    return %c0_i32, %c0_i32_0 : i32, i32
  }
  func.func @transform_4(%arg0: i32) -> (i32, i32) {
    %c0_i32 = arith.constant 0 : i32
    %c0_i32_0 = arith.constant 0 : i32
    %c0_i32_1 = arith.constant 0 : i32
    return %c0_i32, %c0_i32_0 : i32, i32
  }
  func.func @transform_5(%arg0: i32) -> (i32, i32) {
    %c0_i32 = arith.constant 0 : i32
    %c0_i32_0 = arith.constant 0 : i32
    %c0_i32_1 = arith.constant 0 : i32
    return %c0_i32, %c0_i32_0 : i32, i32
  }
  func.func @transform_6(%arg0: i32) -> (i32, i32) {
    %c0_i32 = arith.constant 0 : i32
    %c0_i32_0 = arith.constant 0 : i32
    %c0_i32_1 = arith.constant 0 : i32
    return %c0_i32, %c0_i32_0 : i32, i32
  }
  func.func @transform_7(%arg0: i32) -> (i32, i32) {
    %c0_i32 = arith.constant 0 : i32
    %c0_i32_0 = arith.constant 0 : i32
    return %arg0, %c0_i32 : i32, i32
  }
}

</mosaic_0001>

<llo_original>
// kernel: neural_network_forward.1
$region0: #{neural_network_forward.1}
  #allocation0 [shape = 'u32[]', space=smem, size = 0x4, offset = 0x4, fixed_abs, tag = 'smem constant byte address 0x4 - core index']
  #allocation1 [shape = 'u32[144,128]{1,0:T(1,128)}', space=vmem, size = 0x12000, scoped, tag = 'internal scratch']
  %s0 = inlined_call_operand.hbm [shape: f32[8,16], index: 0, kind: input, shape index: {}]
  %s1 = inlined_call_operand.hbm [shape: f32[16,128], index: 1, kind: input, shape index: {}]
  %s2 = inlined_call_operand.vmem [shape: f32[1,128], index: 2, kind: input, shape index: {}]
  %s3 = inlined_call_operand.hbm [shape: f32[128,128], index: 3, kind: input, shape index: {}]
  %s4 = inlined_call_operand.vmem [shape: f32[1,128], index: 4, kind: input, shape index: {}]
  %s5 = inlined_call_operand.hbm [shape: f32[128,128], index: 5, kind: input, shape index: {}]
  %s6 = inlined_call_operand.vmem [shape: f32[1,128], index: 6, kind: input, shape index: {}]
  %s7 = inlined_call_operand.vmem [shape: f32[8,4], index: 7, kind: output, shape index: {}]
  %s8 = sld [smem:[#allocation0]]
  $region54: #{neural_network_forward.1} parent=0
    _
  %s10 = ssub.s32 1, %s8
  %s11 = scalar_select 0, %s10, %s8
  $region1: #{neural_network_forward.1} parent=0
    #allocation2 [shape = 'u8[4096]{0}', space=vmem, size = 0x1000, scoped, tag = 'input window, operand 0, single buffered']
    #allocation3 [shape = 's32[1]{0}', space=sflag, size = 0x4, scoped, tag = 'scoped memory for neural_network_forward.1']
    #allocation4 [shape = 'u8[8192]{0}', space=vmem, size = 0x2000, scoped, tag = 'input window, operand 1, single buffered']
    #allocation5 [shape = 's32[1]{0}', space=sflag, size = 0x4, scoped, tag = 'scoped memory for neural_network_forward.1']
    #allocation6 [shape = 'u8[65536]{0}', space=vmem, size = 0x10000, scoped, tag = 'input window, operand 3, single buffered']
    #allocation7 [shape = 'u8[65536]{0}', space=vmem, size = 0x10000, scoped, tag = 'input window, operand 5, single buffered']
    #allocation8 [shape = 's32[1]{0}', space=sflag, size = 0x4, scoped, tag = 'scoped memory for neural_network_forward.1']
    %12 = vsyncpa [#allocation3], 0
    %13 = vsyncpa [#allocation5], 0
    %14 = vsyncpa [#allocation8], 0
    // Predicated region
    $region2: #{neural_network_forward.1} parent=1 // pred_check
      _
    $region3: #{neural_network_forward.1} parent=1 // pred_check_branch
      %16 = sbr.rel (0) target = $region5
    $region4: #{neural_network_forward.1} parent=1 // pred_region
      %s18 = ssub.s32 128, 128
      %19 = vsyncadd [#allocation3], %s18
      %s21 = sshll.u32 [#allocation2], 4
      %s22 = int_to_ptr.vmem [resolvable:$true] %s21
      %24 = dma.hbm_to_vmem [thread:$0]  %s0, 128, %s22, [#allocation3]
    $region5: #{neural_network_forward.1} parent=1 // pred_fallthru
      _
    // Predicated region
    $region6: #{neural_network_forward.1} parent=1 // pred_check
      _
    $region7: #{neural_network_forward.1} parent=1 // pred_check_branch
      %26 = sbr.rel (0) target = $region9
    $region8: #{neural_network_forward.1} parent=1 // pred_region
      %s28 = ssub.s32 256, 256
      %29 = vsyncadd [#allocation5], %s28
      %s30 = sshll.u32 [#allocation4], 4
      %s31 = int_to_ptr.vmem [resolvable:$true] %s30
      %36 = dma.hbm_to_vmem [thread:$0]  %s1, 256, %s31, [#allocation5], 128, 128, 8
    $region9: #{neural_network_forward.1} parent=1 // pred_fallthru
      _
    // Predicated region
    $region10: #{neural_network_forward.1} parent=1 // pred_check
      _
    $region11: #{neural_network_forward.1} parent=1 // pred_check_branch
      %38 = sbr.rel (0) target = $region13
    $region12: #{neural_network_forward.1} parent=1 // pred_region
      _
    $region13: #{neural_network_forward.1} parent=1 // pred_fallthru
      _
    // Predicated region
    $region14: #{neural_network_forward.1} parent=1 // pred_check
      _
    $region15: #{neural_network_forward.1} parent=1 // pred_check_branch
      %40 = sbr.rel (0) target = $region17
    $region16: #{neural_network_forward.1} parent=1 // pred_region
      %s42 = ssub.s32 2048, 2048
      %43 = vsyncadd [#allocation5], %s42
      %s44 = sshll.u32 [#allocation6], 4
      %s45 = int_to_ptr.vmem [resolvable:$true] %s44
      %50 = dma.hbm_to_vmem [thread:$0]  %s3, 2048, %s45, [#allocation5], 128, 128, 8
    $region17: #{neural_network_forward.1} parent=1 // pred_fallthru
      _
    // Predicated region
    $region18: #{neural_network_forward.1} parent=1 // pred_check
      _
    $region19: #{neural_network_forward.1} parent=1 // pred_check_branch
      %52 = sbr.rel (0) target = $region21
    $region20: #{neural_network_forward.1} parent=1 // pred_region
      _
    $region21: #{neural_network_forward.1} parent=1 // pred_fallthru
      _
    // Predicated region
    $region22: #{neural_network_forward.1} parent=1 // pred_check
      _
    $region23: #{neural_network_forward.1} parent=1 // pred_check_branch
      %54 = sbr.rel (0) target = $region25
    $region24: #{neural_network_forward.1} parent=1 // pred_region
      %s56 = ssub.s32 2048, 2048
      %57 = vsyncadd [#allocation8], %s56
      %s58 = sshll.u32 [#allocation7], 4
      %s59 = int_to_ptr.vmem [resolvable:$true] %s58
      %64 = dma.hbm_to_vmem [thread:$0]  %s5, 2048, %s59, [#allocation8], 128, 128, 8
    $region25: #{neural_network_forward.1} parent=1 // pred_fallthru
      _
    // Predicated region
    $region26: #{neural_network_forward.1} parent=1 // pred_check
      _
    $region27: #{neural_network_forward.1} parent=1 // pred_check_branch
      %66 = sbr.rel (0) target = $region29
    $region28: #{neural_network_forward.1} parent=1 // pred_region
      _
    $region29: #{neural_network_forward.1} parent=1 // pred_fallthru
      _
    // Predicated region
    $region30: #{neural_network_forward.1} parent=1 // pred_check
      _
    $region31: #{neural_network_forward.1} parent=1 // pred_check_branch
      %68 = sbr.rel (0) target = $region33
    $region32: #{neural_network_forward.1} parent=1 // pred_region
      %69 = dma.done [#allocation3], 128
    $region33: #{neural_network_forward.1} parent=1 // pred_fallthru
      _
    // Predicated region
    $region34: #{neural_network_forward.1} parent=1 // pred_check
      _
    $region35: #{neural_network_forward.1} parent=1 // pred_check_branch
      %71 = sbr.rel (0) target = $region37
    $region36: #{neural_network_forward.1} parent=1 // pred_region
      %72 = dma.done [#allocation5], 256
    $region37: #{neural_network_forward.1} parent=1 // pred_fallthru
      _
    // Predicated region
    $region38: #{neural_network_forward.1} parent=1 // pred_check
      _
    $region39: #{neural_network_forward.1} parent=1 // pred_check_branch
      %74 = sbr.rel (0) target = $region41
    $region40: #{neural_network_forward.1} parent=1 // pred_region
      %75 = dma.done [#allocation5], 2048
    $region41: #{neural_network_forward.1} parent=1 // pred_fallthru
      _
    // Predicated region
    $region42: #{neural_network_forward.1} parent=1 // pred_check
      _
    $region43: #{neural_network_forward.1} parent=1 // pred_check_branch
      %77 = sbr.rel (0) target = $region45
    $region44: #{neural_network_forward.1} parent=1 // pred_region
      %78 = dma.done [#allocation8], 2048
    $region45: #{neural_network_forward.1} parent=1 // pred_fallthru
      _
    %v79 = vld [vmem:[%s2] sm:$0x1]
    %v80 = vld [vmem:[%s4] sm:$0x1]
    %v81 = vld [vmem:[%s6] sm:$0x1]
    %v82 = vld [vmem:[#allocation2] sm:$0xff]
    %v83 = vld [vmem:[#allocation4] sm:$0xff]
    %v84 = vld [vmem:[#allocation4 + $0x8] sm:$0xff]
    %v86 = vlaneseq
    %v87 = vshrl.u32 %v86, 7
    %v88 = vsub.s32 0, %v87
    %v89 = vrot.slane %v79, %v88
    %vm91 = vcmask 130048
    %v93 = vsel %vm91, %v82, 0
    %95 = vmatprep.subr.mxu0 0.0
    %96 = vmatpush1.msra.mxu0 0.0
    %97 = vmatprep.subr.mxu0 0.0
    %98 = vmatpush1.msra.mxu0 0.0
    %99 = vmatprep.subr.mxu0 0.0
    %100 = vmatpush1.msra.mxu0 0.0
    %101 = vmatprep.subr.mxu0 0.0
    %102 = vmatpush1.msra.mxu0 0.0
    %103 = vmatprep.subr.mxu0 0.0
    %104 = vmatpush1.msra.mxu0 0.0
    %105 = vmatprep.subr.mxu0 0.0
    %106 = vmatpush1.msra.mxu0 0.0
    %107 = vmatprep.subr.mxu0 0.0
    %108 = vmatpush1.msra.mxu0 0.0
    %109 = vmatprep.subr.mxu0 0.0
    %110 = vmatpush1.msra.mxu0 0.0
    %111 = vmatprep.subr.mxu0 0.0
    %112 = vmatpush1.msra.mxu0 0.0
    %113 = vmatprep.subr.mxu0 0.0
    %114 = vmatpush1.msra.mxu0 0.0
    %115 = vmatprep.subr.mxu0 0.0
    %116 = vmatpush1.msra.mxu0 0.0
    %117 = vmatprep.subr.mxu0 0.0
    %118 = vmatpush1.msra.mxu0 0.0
    %119 = vmatprep.subr.mxu0 0.0
    %120 = vmatpush1.msra.mxu0 0.0
    %121 = vmatprep.subr.mxu0 0.0
    %122 = vmatpush1.msra.mxu0 0.0
    %123 = vmatprep.subr.mxu0 0.0
    %124 = vmatpush1.msra.mxu0 %v84
    %125 = vmatprep.subr.mxu0 0.0
    %126 = vmatpush1.msra.mxu0 %v83
    %127 = vmatprep.subr.mxu0 0.0
    %128 = vmatpush2.msra.mxu0 0.0
    %129 = vmatprep.subr.mxu0 0.0
    %130 = vmatpush2.msra.mxu0 0.0
    %131 = vmatprep.subr.mxu0 0.0
    %132 = vmatpush2.msra.mxu0 0.0
    %133 = vmatprep.subr.mxu0 0.0
    %134 = vmatpush2.msra.mxu0 0.0
    %135 = vmatprep.subr.mxu0 0.0
    %136 = vmatpush2.msra.mxu0 0.0
    %137 = vmatprep.subr.mxu0 0.0
    %138 = vmatpush2.msra.mxu0 0.0
    %139 = vmatprep.subr.mxu0 0.0
    %140 = vmatpush2.msra.mxu0 0.0
    %141 = vmatprep.subr.mxu0 0.0
    %142 = vmatpush2.msra.mxu0 0.0
    %143 = vmatprep.subr.mxu0 0.0
    %144 = vmatpush2.msra.mxu0 0.0
    %145 = vmatprep.subr.mxu0 0.0
    %146 = vmatpush2.msra.mxu0 0.0
    %147 = vmatprep.subr.mxu0 0.0
    %148 = vmatpush2.msra.mxu0 0.0
    %149 = vmatprep.subr.mxu0 0.0
    %150 = vmatpush2.msra.mxu0 0.0
    %151 = vmatprep.subr.mxu0 0.0
    %152 = vmatpush2.msra.mxu0 0.0
    %153 = vmatprep.subr.mxu0 0.0
    %154 = vmatpush2.msra.mxu0 0.0
    %155 = vmatprep.subr.mxu0 0.0
    %156 = vmatpush2.msra.mxu0 0.0
    %157 = vmatprep.subr.mxu0 0.0
    %158 = vmatpush2.msra.mxu0 0.0
    %159 = vmatprep.mubr.f32.mxu0 0.0
    %160 = vmatmul.mubr.f32.gmra.mxu0 %v93
    %v161 = vpop.f32.mrf.mxu0
    %v162 = vadd.f32 %v89, %v161
    %v163 = vpop.f32.mrf.mxu0
    %164 = vdwg.mxu0
    %v165 = vmax.f32 %v162, 0.0
    %v166 = vld [vmem:[#allocation6] sm:$0xff]
    %v167 = vld [vmem:[#allocation6 + $0x8] sm:$0xff]
    %v168 = vld [vmem:[#allocation6 + $0x10] sm:$0xff]
    %v169 = vld [vmem:[#allocation6 + $0x18] sm:$0xff]
    %v170 = vld [vmem:[#allocation6 + $0x20] sm:$0xff]
    %v171 = vld [vmem:[#allocation6 + $0x28] sm:$0xff]
    %v172 = vld [vmem:[#allocation6 + $0x30] sm:$0xff]
    %v173 = vld [vmem:[#allocation6 + $0x38] sm:$0xff]
    %v174 = vld [vmem:[#allocation6 + $0x40] sm:$0xff]
    %v175 = vld [vmem:[#allocation6 + $0x48] sm:$0xff]
    %v176 = vld [vmem:[#allocation6 + $0x50] sm:$0xff]
    %v177 = vld [vmem:[#allocation6 + $0x58] sm:$0xff]
    %v178 = vld [vmem:[#allocation6 + $0x60] sm:$0xff]
    %v179 = vld [vmem:[#allocation6 + $0x68] sm:$0xff]
    %v180 = vld [vmem:[#allocation6 + $0x70] sm:$0xff]
    %v181 = vld [vmem:[#allocation6 + $0x78] sm:$0xff]
    %v183 = vlaneseq
    %v184 = vshrl.u32 %v183, 7
    %v185 = vsub.s32 0, %v184
    %v186 = vrot.slane %v80, %v185
    %188 = vmatprep.subr.mxu0 0.0
    %189 = vmatpush1.msra.mxu0 %v181
    %190 = vmatprep.subr.mxu0 0.0
    %191 = vmatpush1.msra.mxu0 %v180
    %192 = vmatprep.subr.mxu0 0.0
    %193 = vmatpush1.msra.mxu0 %v179
    %194 = vmatprep.subr.mxu0 0.0
    %195 = vmatpush1.msra.mxu0 %v178
    %196 = vmatprep.subr.mxu0 0.0
    %197 = vmatpush1.msra.mxu0 %v177
    %198 = vmatprep.subr.mxu0 0.0
    %199 = vmatpush1.msra.mxu0 %v176
    %200 = vmatprep.subr.mxu0 0.0
    %201 = vmatpush1.msra.mxu0 %v175
    %202 = vmatprep.subr.mxu0 0.0
    %203 = vmatpush1.msra.mxu0 %v174
    %204 = vmatprep.subr.mxu0 0.0
    %205 = vmatpush1.msra.mxu0 %v173
    %206 = vmatprep.subr.mxu0 0.0
    %207 = vmatpush1.msra.mxu0 %v172
    %208 = vmatprep.subr.mxu0 0.0
    %209 = vmatpush1.msra.mxu0 %v171
    %210 = vmatprep.subr.mxu0 0.0
    %211 = vmatpush1.msra.mxu0 %v170
    %212 = vmatprep.subr.mxu0 0.0
    %213 = vmatpush1.msra.mxu0 %v169
    %214 = vmatprep.subr.mxu0 0.0
    %215 = vmatpush1.msra.mxu0 %v168
    %216 = vmatprep.subr.mxu0 0.0
    %217 = vmatpush1.msra.mxu0 %v167
    %218 = vmatprep.subr.mxu0 0.0
    %219 = vmatpush1.msra.mxu0 %v166
    %220 = vmatprep.subr.mxu0 0.0
    %221 = vmatpush2.msra.mxu0 0.0
    %222 = vmatprep.subr.mxu0 0.0
    %223 = vmatpush2.msra.mxu0 0.0
    %224 = vmatprep.subr.mxu0 0.0
    %225 = vmatpush2.msra.mxu0 0.0
    %226 = vmatprep.subr.mxu0 0.0
    %227 = vmatpush2.msra.mxu0 0.0
    %228 = vmatprep.subr.mxu0 0.0
    %229 = vmatpush2.msra.mxu0 0.0
    %230 = vmatprep.subr.mxu0 0.0
    %231 = vmatpush2.msra.mxu0 0.0
    %232 = vmatprep.subr.mxu0 0.0
    %233 = vmatpush2.msra.mxu0 0.0
    %234 = vmatprep.subr.mxu0 0.0
    %235 = vmatpush2.msra.mxu0 0.0
    %236 = vmatprep.subr.mxu0 0.0
    %237 = vmatpush2.msra.mxu0 0.0
    %238 = vmatprep.subr.mxu0 0.0
    %239 = vmatpush2.msra.mxu0 0.0
    %240 = vmatprep.subr.mxu0 0.0
    %241 = vmatpush2.msra.mxu0 0.0
    %242 = vmatprep.subr.mxu0 0.0
    %243 = vmatpush2.msra.mxu0 0.0
    %244 = vmatprep.subr.mxu0 0.0
    %245 = vmatpush2.msra.mxu0 0.0
    %246 = vmatprep.subr.mxu0 0.0
    %247 = vmatpush2.msra.mxu0 0.0
    %248 = vmatprep.subr.mxu0 0.0
    %249 = vmatpush2.msra.mxu0 0.0
    %250 = vmatprep.subr.mxu0 0.0
    %251 = vmatpush2.msra.mxu0 0.0
    %252 = vmatprep.mubr.f32.mxu0 0.0
    %253 = vmatmul.mubr.f32.gmra.mxu0 %v165
    %v254 = vpop.f32.mrf.mxu0
    %v255 = vadd.f32 %v186, %v254
    %v256 = vpop.f32.mrf.mxu0
    %257 = vdwg.mxu0
    %v258 = vmax.f32 %v255, 0.0
    %v259 = vld [vmem:[#allocation7] sm:$0xff]
    %v260 = vld [vmem:[#allocation7 + $0x8] sm:$0xff]
    %v261 = vld [vmem:[#allocation7 + $0x10] sm:$0xff]
    %v262 = vld [vmem:[#allocation7 + $0x18] sm:$0xff]
    %v263 = vld [vmem:[#allocation7 + $0x20] sm:$0xff]
    %v264 = vld [vmem:[#allocation7 + $0x28] sm:$0xff]
    %v265 = vld [vmem:[#allocation7 + $0x30] sm:$0xff]
    %v266 = vld [vmem:[#allocation7 + $0x38] sm:$0xff]
    %v267 = vld [vmem:[#allocation7 + $0x40] sm:$0xff]
    %v268 = vld [vmem:[#allocation7 + $0x48] sm:$0xff]
    %v269 = vld [vmem:[#allocation7 + $0x50] sm:$0xff]
    %v270 = vld [vmem:[#allocation7 + $0x58] sm:$0xff]
    %v271 = vld [vmem:[#allocation7 + $0x60] sm:$0xff]
    %v272 = vld [vmem:[#allocation7 + $0x68] sm:$0xff]
    %v273 = vld [vmem:[#allocation7 + $0x70] sm:$0xff]
    %v274 = vld [vmem:[#allocation7 + $0x78] sm:$0xff]
    %v276 = vlaneseq
    %v277 = vshrl.u32 %v276, 7
    %v278 = vsub.s32 0, %v277
    %v279 = vrot.slane %v81, %v278
    %281 = vmatprep.subr.mxu0 0.0
    %282 = vmatpush1.msra.mxu0 %v274
    %283 = vmatprep.subr.mxu0 0.0
    %284 = vmatpush1.msra.mxu0 %v273
    %285 = vmatprep.subr.mxu0 0.0
    %286 = vmatpush1.msra.mxu0 %v272
    %287 = vmatprep.subr.mxu0 0.0
    %288 = vmatpush1.msra.mxu0 %v271
    %289 = vmatprep.subr.mxu0 0.0
    %290 = vmatpush1.msra.mxu0 %v270
    %291 = vmatprep.subr.mxu0 0.0
    %292 = vmatpush1.msra.mxu0 %v269
    %293 = vmatprep.subr.mxu0 0.0
    %294 = vmatpush1.msra.mxu0 %v268
    %295 = vmatprep.subr.mxu0 0.0
    %296 = vmatpush1.msra.mxu0 %v267
    %297 = vmatprep.subr.mxu0 0.0
    %298 = vmatpush1.msra.mxu0 %v266
    %299 = vmatprep.subr.mxu0 0.0
    %300 = vmatpush1.msra.mxu0 %v265
    %301 = vmatprep.subr.mxu0 0.0
    %302 = vmatpush1.msra.mxu0 %v264
    %303 = vmatprep.subr.mxu0 0.0
    %304 = vmatpush1.msra.mxu0 %v263
    %305 = vmatprep.subr.mxu0 0.0
    %306 = vmatpush1.msra.mxu0 %v262
    %307 = vmatprep.subr.mxu0 0.0
    %308 = vmatpush1.msra.mxu0 %v261
    %309 = vmatprep.subr.mxu0 0.0
    %310 = vmatpush1.msra.mxu0 %v260
    %311 = vmatprep.subr.mxu0 0.0
    %312 = vmatpush1.msra.mxu0 %v259
    %313 = vmatprep.subr.mxu0 0.0
    %314 = vmatpush2.msra.mxu0 0.0
    %315 = vmatprep.subr.mxu0 0.0
    %316 = vmatpush2.msra.mxu0 0.0
    %317 = vmatprep.subr.mxu0 0.0
    %318 = vmatpush2.msra.mxu0 0.0
    %319 = vmatprep.subr.mxu0 0.0
    %320 = vmatpush2.msra.mxu0 0.0
    %321 = vmatprep.subr.mxu0 0.0
    %322 = vmatpush2.msra.mxu0 0.0
    %323 = vmatprep.subr.mxu0 0.0
    %324 = vmatpush2.msra.mxu0 0.0
    %325 = vmatprep.subr.mxu0 0.0
    %326 = vmatpush2.msra.mxu0 0.0
    %327 = vmatprep.subr.mxu0 0.0
    %328 = vmatpush2.msra.mxu0 0.0
    %329 = vmatprep.subr.mxu0 0.0
    %330 = vmatpush2.msra.mxu0 0.0
    %331 = vmatprep.subr.mxu0 0.0
    %332 = vmatpush2.msra.mxu0 0.0
    %333 = vmatprep.subr.mxu0 0.0
    %334 = vmatpush2.msra.mxu0 0.0
    %335 = vmatprep.subr.mxu0 0.0
    %336 = vmatpush2.msra.mxu0 0.0
    %337 = vmatprep.subr.mxu0 0.0
    %338 = vmatpush2.msra.mxu0 0.0
    %339 = vmatprep.subr.mxu0 0.0
    %340 = vmatpush2.msra.mxu0 0.0
    %341 = vmatprep.subr.mxu0 0.0
    %342 = vmatpush2.msra.mxu0 0.0
    %343 = vmatprep.subr.mxu0 0.0
    %344 = vmatpush2.msra.mxu0 0.0
    %345 = vmatprep.mubr.f32.mxu0 0.0
    %346 = vmatmul.mubr.f32.gmra.mxu0 %v258
    %v347 = vpop.f32.mrf.mxu0
    %v348 = vadd.f32 %v279, %v347
    %v349 = vpop.f32.mrf.mxu0
    %350 = vdwg.mxu0
    %v351 = vxor.u32 %v348, 2147483648
    %v352 = vmul.f32 %v351, 1.442695
    %v353 = vpow.pop %v352
    %v354 = vadd.f32 %v353, 1.0
    %v355 = vrcp.pop %v354
    %v356 = vmul.f32 1.0, %v355
    %vm357 = vcmask 31744
    %358 = vst.msk [vmem:[%s7] sm:$0xff] %vm357, %v356
    // Predicated region
    $region46: #{neural_network_forward.1} parent=1 // pred_check
      _
    $region47: #{neural_network_forward.1} parent=1 // pred_check_branch
      %360 = sbr.rel (0) target = $region49
    $region48: #{neural_network_forward.1} parent=1 // pred_region
      _
    $region49: #{neural_network_forward.1} parent=1 // pred_fallthru
      _
    // Predicated region
    $region50: #{neural_network_forward.1} parent=1 // pred_check
      _
    $region51: #{neural_network_forward.1} parent=1 // pred_check_branch
      %362 = sbr.rel (0) target = $region53
    $region52: #{neural_network_forward.1} parent=1 // pred_region
      _
    $region53: #{neural_network_forward.1} parent=1 // pred_fallthru
      _
    %363 = vsyncpa [#allocation3], 1
    %364 = vsyncpa [#allocation5], 1
    %365 = vsyncpa [#allocation8], 1

</llo_original>
